<compile_context>
chip_gen: v5e
topology: v5e:2x2
jax: 0.10.0
libtpu: 0.0.40
codegen_flags: <defaults>
</compile_context>

<pallas_src>
import jax
import jax.numpy as jnp
from jax import lax
from jax.experimental import pallas as pl
from jax.experimental.pallas import tpu as pltpu


def linear_va(x, w, b, *, block_b=None, block_k=None,
              min_pallas_bytes=1 << 20, force_pallas=False):
    """y = x @ w.T + b with x:(B, D), w:(1, D), b:(1,) -> (B, 1)."""
    B, D = x.shape
    itemsize = x.dtype.itemsize

    # Launch-overhead-dominated sizes: let XLA fuse the GEMV (already at
    # roofline below ~1 MiB of x traffic).
    if not force_pallas and (B < 8 or B * D * itemsize < min_pallas_bytes):
        return (x @ w.T + b).astype(x.dtype)

    # dtype-aware sublane granularity (packed sublanes for narrow dtypes).
    sub = {1: 32, 2: 16}.get(itemsize, 8)

    # Budget for the double-buffered x stream (2 tiles). We set
    # vmem_limit_bytes explicitly below, so this is safe on v5e/v6e/v7x.
    x_budget = 24 << 20

    # ---- K (feature) tiling: only needed when even a minimal-row tile of the
    # full D would bust the VMEM budget (huge D). ----
    if block_k is None:
        max_rows_full_d = x_budget // (2 * D * itemsize)
        if max_rows_full_d >= sub:
            block_k = D
        else:
            rows_target = 8 * sub
            block_k = max(128, (x_budget // (2 * rows_target * itemsize)) // 128 * 128)
    block_k = min(block_k, D)
    nk = pl.cdiv(D, block_k)
    ragged_k = (D % block_k) != 0

    # ---- Batch tile sizing. ----
    if block_b is None:
        if block_k == D:
            max_rows = x_budget // (2 * D * itemsize)
            cap = min(B, max_rows, 8192)
        else:
            cap = min(B, 8 * sub)
        # Keep >= ~8 grid steps along the parallel axis so v7x's two
        # TensorCores both get work and double-buffering has depth.
        min_steps = 8
        cap = min(cap, max(pl.cdiv(B, min_steps), sub))
        block_b = max(sub, (cap // sub) * sub)
    nb = pl.cdiv(B, block_b)

    # Resident VMEM footprint -> explicit scoped-VMEM limit (plus margin).
    resident = (2 * block_b * block_k * itemsize   # x, double-buffered
                + 2 * block_k * itemsize           # weight row
                + 2 * block_b * itemsize           # output column
                + block_b * 4)                     # f32 accumulator scratch
    vmem_limit = int(min(max(resident + (8 << 20), 24 << 20), 48 << 20))

    def kernel(x_ref, w_ref, b_ref, o_ref, acc_ref):
        k = pl.program_id(1)

        @pl.when(k == 0)
        def _init():
            acc_ref[...] = jnp.zeros_like(acc_ref)

        xb = x_ref[...]
        wb = w_ref[...]
        if ragged_k:
            # Zero BOTH operands past D on the last K tile so padded garbage
            # (possibly NaN) can never reach the accumulator.
            col = k * block_k + lax.broadcasted_iota(jnp.int32, (1, block_k), 1)
            valid = col < D
            xb = jnp.where(valid, xb, jnp.zeros_like(xb))
            wb = jnp.where(valid, wb, jnp.zeros_like(wb))

        # (TB, TK) x (1, TK)^T -> (TB, 1); MXU streams, f32 accumulation,
        # no (TB, TK) elementwise intermediate to spill.
        acc_ref[...] += lax.dot_general(
            xb, wb,
            dimension_numbers=(((1,), (1,)), ((), ())),
            preferred_element_type=jnp.float32)

        @pl.when(k == pl.num_programs(1) - 1)
        def _finalize():
            o_ref[...] = (acc_ref[...] + b_ref[0]).astype(o_ref.dtype)

    cost = pl.CostEstimate(
        flops=2 * B * D,
        transcendentals=0,
        bytes_accessed=(B * D + D + B) * itemsize,
    )

    return pl.pallas_call(
        kernel,
        out_shape=jax.ShapeDtypeStruct((B, 1), x.dtype),
        grid=(nb, nk),
        in_specs=[
            # x: batch- and K-tiled, auto double-buffered HBM->VMEM stream.
            pl.BlockSpec((block_b, block_k), lambda i, k: (i, k)),
            # w: lane-dense row, batch-constant index_map -> resident in VMEM.
            pl.BlockSpec((1, block_k), lambda i, k: (0, k)),
            # b: scalar bias in SMEM (no padded VMEM tile / DMA).
            pl.BlockSpec(memory_space=pltpu.MemorySpace.SMEM),
        ],
        out_specs=pl.BlockSpec((block_b, 1), lambda i, k: (i, 0)),
        scratch_shapes=[pltpu.VMEM((block_b, 1), jnp.float32)],
        compiler_params=pltpu.CompilerParams(
            dimension_semantics=("parallel", "arbitrary"),
            vmem_limit_bytes=vmem_limit,
        ),
        cost_estimate=cost,
    )(x, w, b)


class NeuralNetworkVA:
    """JAX/Pallas equivalent of the PyTorch module: a single Linear(dims, 1)."""

    def __init__(self, dims, key):
        # Match PyTorch nn.Linear default init: U(-1/sqrt(dims), 1/sqrt(dims)).
        kw, kb = jax.random.split(key)
        bound = 1.0 / (float(dims) ** 0.5)
        # PyTorch weight layout: (out_features=1, in_features=dims).
        self.w = jax.random.uniform(kw, (1, dims), jnp.float32, -bound, bound)
        self.b = jax.random.uniform(kb, (1,), jnp.float32, -bound, bound)

    def __call__(self, x, **kwargs):
        return linear_va(x, self.w, self.b, **kwargs)


if __name__ == "__main__":
    key = jax.random.PRNGKey(0)
    k_x, k_p, k_x2, k_p2, k_x3 = jax.random.split(key, 5)

    # 1) Main Pallas path: batch-tiled GEMV, 8 grid steps, resident weight.
    B, D = 256, 128
    x = jax.random.normal(k_x, (B, D), dtype=jnp.float32)
    model = NeuralNetworkVA(D, k_p)
    y = jax.block_until_ready(model(x, force_pallas=True))
    y_ref = x @ model.w.T + model.b
    assert y.shape == (B, 1)
    assert jnp.allclose(y, y_ref, atol=1e-4, rtol=1e-4), float(
        jnp.max(jnp.abs(y - y_ref)))

    # 2) K-tiled path with ragged K tail (exercises accumulator + tail mask).
    B2, D2 = 64, 200
    x2 = jax.random.normal(k_x2, (B2, D2), dtype=jnp.float32)
    model2 = NeuralNetworkVA(D2, k_p2)
    y2 = jax.block_until_ready(model2(x2, block_k=128, force_pallas=True))
    y2_ref = x2 @ model2.w.T + model2.b
    assert jnp.allclose(y2, y2_ref, atol=1e-4, rtol=1e-4), float(
        jnp.max(jnp.abs(y2 - y2_ref)))

    # 3) Tiny-problem bypass: wrapper skips Pallas (launch cost >> work).
    x3 = jax.random.normal(k_x3, (8, 32), dtype=jnp.float32)
    model3 = NeuralNetworkVA(32, k_p)
    y3 = jax.block_until_ready(model3(x3))
    assert jnp.allclose(y3, x3 @ model3.w.T + model3.b, atol=1e-5, rtol=1e-5)

    print("KERNEL_OK")
</pallas_src>

<mosaic_0001>
module attributes {stable_mosaic.version = 11 : i64} {
  func.func @kernel(%arg0: i32, %arg1: i32, %arg2: memref<32x128xf32, #tpu.memory_space<vmem>>, %arg3: memref<1x128xf32, #tpu.memory_space<vmem>>, %arg4: memref<1xf32, #tpu.memory_space<smem>>, %arg5: memref<32x1xf32, #tpu.memory_space<vmem>>, %arg6: memref<32x1xf32, #tpu.memory_space<vmem>>) attributes {dimension_semantics = [#tpu.dimension_semantics<parallel>, #tpu.dimension_semantics<arbitrary>], iteration_bounds = array<i64: 8, 1>, scalar_prefetch = 0 : i64, scratch_operands = 1 : i64, tpu.core_type = #tpu.core_type<tc>, window_params = [{transform_indices = @transform_0, window_bounds = array<i64: 32, 128>}, {transform_indices = @transform_1, window_bounds = array<i64: 1, 128>}, {transform_indices = @transform_2, window_bounds = array<i64: 1>}, {transform_indices = @transform_3, window_bounds = array<i64: 32, 1>}]} {
    %c0_i32 = arith.constant 0 : i32
    %0 = arith.cmpi eq, %arg1, %c0_i32 : i32
    %1 = arith.extui %0 : i1 to i32
    %c0_i32_0 = arith.constant 0 : i32
    %2 = arith.cmpi ne, %1, %c0_i32_0 : i32
    scf.if %2 {
      %cst_10 = arith.constant 0.000000e+00 : f32
      %12 = vector.broadcast %cst_10 : f32 to vector<32x1xf32>
      %c0_11 = arith.constant 0 : index
      %c0_12 = arith.constant 0 : index
      %13 = vector.load %arg6[%c0_11, %c0_12] : memref<32x1xf32, #tpu.memory_space<vmem>>, vector<32x1xf32>
      tpu.vector_store %arg6[%c0_11, %c0_12], %12 {strides = array<i32>} : memref<32x1xf32, #tpu.memory_space<vmem>>, vector<32x1xf32>,
    } else {
    }
    %c0 = arith.constant 0 : index
    %c0_1 = arith.constant 0 : index
    %3 = vector.load %arg2[%c0, %c0_1] : memref<32x128xf32, #tpu.memory_space<vmem>>, vector<32x128xf32>
    %c0_2 = arith.constant 0 : index
    %c0_3 = arith.constant 0 : index
    %4 = vector.load %arg3[%c0_2, %c0_3] : memref<1x128xf32, #tpu.memory_space<vmem>>, vector<1x128xf32>
    %c0_4 = arith.constant 0 : index
    %c0_5 = arith.constant 0 : index
    %5 = vector.load %arg6[%c0_4, %c0_5] : memref<32x1xf32, #tpu.memory_space<vmem>>, vector<32x1xf32>
    %cst = arith.constant dense<0.000000e+00> : vector<32x1xf32>
    %6 = tpu.matmul %3, %4, %cst {dimension_numbers = #tpu.dot_dimension_numbers<[1], [1], [0], [0], [0, 0, 1, 0], [], []>} : vector<32x128xf32>, vector<1x128xf32>, vector<32x1xf32> -> vector<32x1xf32>
    %7 = arith.addf %5, %6 : vector<32x1xf32>
    %c0_6 = arith.constant 0 : index
    %c0_7 = arith.constant 0 : index
    %8 = vector.load %arg6[%c0_6, %c0_7] : memref<32x1xf32, #tpu.memory_space<vmem>>, vector<32x1xf32>
    tpu.vector_store %arg6[%c0_6, %c0_7], %7 {strides = array<i32>} : memref<32x1xf32, #tpu.memory_space<vmem>>, vector<32x1xf32>,
    %c0_i32_8 = arith.constant 0 : i32
    %9 = arith.cmpi eq, %arg1, %c0_i32_8 : i32
    %10 = arith.extui %9 : i1 to i32
    %c0_i32_9 = arith.constant 0 : i32
    %11 = arith.cmpi ne, %10, %c0_i32_9 : i32
    scf.if %11 {
      %c0_10 = arith.constant 0 : index
      %c0_11 = arith.constant 0 : index
      %12 = vector.load %arg6[%c0_10, %c0_11] : memref<32x1xf32, #tpu.memory_space<vmem>>, vector<32x1xf32>
      %c0_12 = arith.constant 0 : index
      %13 = memref.load %arg4[%c0_12] : memref<1xf32, #tpu.memory_space<smem>>
      %14 = vector.broadcast %13 : f32 to vector<32x1xf32>
      %15 = arith.addf %12, %14 : vector<32x1xf32>
      %c0_13 = arith.constant 0 : index
      %c0_14 = arith.constant 0 : index
      %16 = vector.load %arg5[%c0_13, %c0_14] : memref<32x1xf32, #tpu.memory_space<vmem>>, vector<32x1xf32>
      tpu.vector_store %arg5[%c0_13, %c0_14], %15 {strides = array<i32>} : memref<32x1xf32, #tpu.memory_space<vmem>>, vector<32x1xf32>,
    } else {
    }
    return
  }
  func.func @transform_0(%arg0: i32, %arg1: i32) -> (i32, i32) {
    %c0_i32 = arith.constant 0 : i32
    return %arg0, %arg1 : i32, i32
  }
  func.func @transform_1(%arg0: i32, %arg1: i32) -> (i32, i32) {
    %c0_i32 = arith.constant 0 : i32
    %c0_i32_0 = arith.constant 0 : i32
    return %c0_i32, %arg1 : i32, i32
  }
  func.func @transform_2(%arg0: i32, %arg1: i32) -> i32 {
    %c0_i32 = arith.constant 0 : i32
    %c0_i32_0 = arith.constant 0 : i32
    return %c0_i32 : i32
  }
  func.func @transform_3(%arg0: i32, %arg1: i32) -> (i32, i32) {
    %c0_i32 = arith.constant 0 : i32
    %c0_i32_0 = arith.constant 0 : i32
    return %arg0, %c0_i32 : i32, i32
  }
}

</mosaic_0001>

<llo_original>
// kernel: tpu_custom_call.1
$region0: #{tpu_custom_call.1}
  #allocation0 [shape = 'u32[]', space=smem, size = 0x4, offset = 0x4, fixed_abs, tag = 'smem constant byte address 0x4 - core index']
  #allocation1 [shape = 'u32[72,128]{1,0:T(1,128)}', space=vmem, size = 0x9000, scoped, tag = 'internal scratch']
  #allocation2 [shape = 'f32[32,1]{1,0:T(8,128)}', space=vmem, size = 0x4000, scoped, tag = 'scratch operand']
  #allocation3 [shape = 'f32[1]{0:T(128)S(6)}', space=smem, size = 0x200, scoped, tag = 'scoped memory for tpu_custom_call.1']
  %s0 = inlined_call_operand.hbm [shape: f32[256,128], index: 0, kind: input, shape index: {}]
  %s1 = inlined_call_operand.vmem [shape: f32[1,128], index: 1, kind: input, shape index: {}]
  %s2 = inlined_call_operand.<no memory space> [shape: f32[1], index: 2, kind: input, shape index: {}]
  %s3 = inlined_call_operand.vmem [shape: f32[256,1], index: 3, kind: output, shape index: {}]
  %s4 = sld [smem:[#allocation0]]
  $region57: #{tpu_custom_call.1} parent=0
    _
  %s6 = ssub.s32 1, %s4
  %s7 = scalar_select 0, %s6, %s4
  %8 = sst [smem:[#allocation3]] %s2
  $region1: #{tpu_custom_call.1} parent=0
    #allocation4 [shape = 'u8[32768]{0}', space=vmem, size = 0x8000, scoped, tag = 'input window, operand 0']
    #allocation5 [shape = 's32[2]{0}', space=sflag, size = 0x8, scoped, tag = 'scoped memory for tpu_custom_call.1']
    %9 = vsyncpa [#allocation5], 0
    %s10 = scalar_lea.sflag [#allocation5], 1
    %11 = vsyncpa %s10, 0
    loop: start=0, step=1, limit=10
    $region2: #{tpu_custom_call.1} parent=1 // loop_pre_header
      _
    $region3: #{tpu_custom_call.1} parent=1 // loop_header
      %s13 = sphi 0, %s17
      %p14 = scmp.ge.s32.totalorder %s13, 10
      %s20 = sphi 0, %s32
      %s21 = sphi 0, %s28
      %s22 = sphi 0, %s20
      %s23 = sphi 0, %s21
      %s24 = sphi 0, %s22
      %s25 = sphi 0, %s23
      %s37 = sphi 0, %s39
      %s40 = sphi 0, %s37
      %s41 = sphi 0, %s40
      %s57 = sphi 0, %s41
      %s63 = sphi 0, %s65
      %s66 = sphi 0, %s63
      %s67 = sphi 0, %s66
      %s83 = sphi 0, %s67
      %s87 = sphi 0, %s87
      %s89 = sphi 0, %s87
      %s90 = sphi 0, %s89
      %s104 = sphi 0, %s90
      %s110 = sphi 0, %s112
      %s113 = sphi 0, %s110
      %s114 = sphi 0, %s113
      %s130 = sphi 0, %s114
    $region4: #{tpu_custom_call.1} parent=1 // loop_header_branch
      %16 = sbr.rel (%p14) target = $region8
    $region5: #{tpu_custom_call.1} parent=1 // loop_body
      %s18 = ssub.s32 %s13, 1
      %s19 = ssub.s32 %s13, 2
      %s26 = sadd.s32 1, %s21
      %p27 = scmp.ge.s32.totalorder %s26, 1
      %s28 = scalar_select %p27, 0, %s26
      %s29 = sadd.s32 1, %s20
      %s30 = scalar_select %p27, %s29, %s20
      %p31 = scmp.ge.s32.totalorder %s30, 8
      %s32 = scalar_select %p31, 0, %s30
      %s33 = ssub.s32 %s20, %s32
      %s34 = ssub.s32 %s21, %s28
      %s35 = sor.u32 %s33, %s34
      %p36 = scmp.eq.s32.totalorder %s35, 0
      %s38 = sadd.s32 %s37, 1
      %s39 = scalar_select %p36, %s37, %s38
      %p42 = pneg %p36
      %p43 = scmp.eq.s32.totalorder %s13, 7
      %p44 = por %p42, %p43
      %p45 = scmp.ne.s32.totalorder %s37, %s40
      %p46 = scmp.eq.s32.totalorder %s13, 0
      %p47 = por %p45, %p46
      %p48 = scmp.ne.s32.totalorder %s37, %s40
      %p49 = scmp.eq.s32.totalorder %s18, 7
      %p50 = por %p48, %p49
      %p51 = scmp.ne.s32.totalorder %s40, %s41
      %p52 = scmp.eq.s32.totalorder %s18, 0
      %p53 = por %p51, %p52
      %p54 = scmp.ne.s32.totalorder %s40, %s41
      %p55 = scmp.eq.s32.totalorder %s19, 7
      %p56 = por %p54, %p55
      %p58 = scmp.ne.s32.totalorder %s41, %s57
      %p59 = scmp.eq.s32.totalorder %s19, 0
      %p60 = por %p58, %p59
      %s61 = ssub.s32 %s21, %s28
      %p62 = scmp.eq.s32.totalorder %s61, 0
      %s64 = sadd.s32 %s63, 1
      %s65 = scalar_select %p62, %s63, %s64
      %p68 = pneg %p62
      %p69 = scmp.eq.s32.totalorder %s13, 7
      %p70 = por %p68, %p69
      %p71 = scmp.ne.s32.totalorder %s63, %s66
      %p72 = scmp.eq.s32.totalorder %s13, 0
      %p73 = por %p71, %p72
      %p74 = scmp.ne.s32.totalorder %s63, %s66
      %p75 = scmp.eq.s32.totalorder %s18, 7
      %p76 = por %p74, %p75
      %p77 = scmp.ne.s32.totalorder %s66, %s67
      %p78 = scmp.eq.s32.totalorder %s18, 0
      %p79 = por %p77, %p78
      %p80 = scmp.ne.s32.totalorder %s66, %s67
      %p81 = scmp.eq.s32.totalorder %s19, 7
      %p82 = por %p80, %p81
      %p84 = scmp.ne.s32.totalorder %s67, %s83
      %p85 = scmp.eq.s32.totalorder %s19, 0
      %p86 = por %p84, %p85
      %s88 = sadd.s32 %s87, 1
      %p91 = scmp.eq.s32.totalorder %s13, 7
      %p92 = scmp.ne.s32.totalorder %s87, %s89
      %p93 = scmp.eq.s32.totalorder %s13, 0
      %p94 = por %p92, %p93
      %p95 = scmp.ne.s32.totalorder %s87, %s89
      %p96 = scmp.eq.s32.totalorder %s18, 7
      %p97 = por %p95, %p96
      %p98 = scmp.ne.s32.totalorder %s89, %s90
      %p99 = scmp.eq.s32.totalorder %s18, 0
      %p100 = por %p98, %p99
      %p101 = scmp.ne.s32.totalorder %s89, %s90
      %p102 = scmp.eq.s32.totalorder %s19, 7
      %p103 = por %p101, %p102
      %p105 = scmp.ne.s32.totalorder %s90, %s104
      %p106 = scmp.eq.s32.totalorder %s19, 0
      %p107 = por %p105, %p106
      %s108 = ssub.s32 %s20, %s32
      %p109 = scmp.eq.s32.totalorder %s108, 0
      %s111 = sadd.s32 %s110, 1
      %s112 = scalar_select %p109, %s110, %s111
      %p115 = pneg %p109
      %p116 = scmp.eq.s32.totalorder %s13, 7
      %p117 = por %p115, %p116
      %p118 = scmp.ne.s32.totalorder %s110, %s113
      %p119 = scmp.eq.s32.totalorder %s13, 0
      %p120 = por %p118, %p119
      %p121 = scmp.ne.s32.totalorder %s110, %s113
      %p122 = scmp.eq.s32.totalorder %s18, 7
      %p123 = por %p121, %p122
      %p124 = scmp.ne.s32.totalorder %s113, %s114
      %p125 = scmp.eq.s32.totalorder %s18, 0
      %p126 = por %p124, %p125
      %p127 = scmp.ne.s32.totalorder %s113, %s114
      %p128 = scmp.eq.s32.totalorder %s19, 7
      %p129 = por %p127, %p128
      %p131 = scmp.ne.s32.totalorder %s114, %s130
      %p132 = scmp.eq.s32.totalorder %s19, 0
      %p133 = por %p131, %p132
      %p134 = scmp.le.s32.totalorder 1, %s13
      %p135 = scmp.lt.s32.totalorder %s13, 9
      %p136 = pnand %p134, %p135
      %p137 = pneg %p136
      // Predicated region
      $region9: #{tpu_custom_call.1} parent=5 // pred_check
        _
      $region10: #{tpu_custom_call.1} parent=5 // pred_check_branch
        %139 = sbr.rel (%p136) target = $region12
      $region11: #{tpu_custom_call.1} parent=5 // pred_region
        %s140 = ssub.s32 %s13, 1
        // Predicated region
        $region13: #{tpu_custom_call.1} parent=11 // pred_check
          %p141 = pneg %p79
        $region14: #{tpu_custom_call.1} parent=11 // pred_check_branch
          %143 = sbr.rel (%p141) target = $region16
        $region15: #{tpu_custom_call.1} parent=11 // pred_region
          %p144 = scmp.lt.s32.totalorder %s23, 0
          %s145 = scalar_select %p144, %s23, 0
          %s146 = scalar_lea.vmem %s1, %s145
        $region16: #{tpu_custom_call.1} parent=11 // pred_fallthru
          _
        // Predicated region
        $region17: #{tpu_custom_call.1} parent=11 // pred_check
          %p147 = pneg %p100
        $region18: #{tpu_custom_call.1} parent=11 // pred_check_branch
          %149 = sbr.rel (%p147) target = $region20
        $region19: #{tpu_custom_call.1} parent=11 // pred_region
          _
        $region20: #{tpu_custom_call.1} parent=11 // pred_fallthru
          _
      $region12: #{tpu_custom_call.1} parent=5 // pred_fallthru
        _
      %p150 = scmp.lt.s32.totalorder %s13, 8
      // Predicated region
      $region21: #{tpu_custom_call.1} parent=5 // pred_check
        %p151 = pneg %p150
      $region22: #{tpu_custom_call.1} parent=5 // pred_check_branch
        %153 = sbr.rel (%p151) target = $region24
      $region23: #{tpu_custom_call.1} parent=5 // pred_region
        // Predicated region
        $region25: #{tpu_custom_call.1} parent=23 // pred_check
          %p154 = pneg %p47
        $region26: #{tpu_custom_call.1} parent=23 // pred_check_branch
          %156 = sbr.rel (%p154) target = $region28
        $region27: #{tpu_custom_call.1} parent=23 // pred_region
          %s157 = sand.u32 %s37, 1
          %s158 = scalar_lea.sflag [#allocation5], %s157
          %s159 = sand.u32 %s37, 1
          %s160 = smul.addr %s159, 32
          %s161 = scalar_lea.vmem [#allocation4], %s160
          %s162 = smul.u32 4, %s20
          %164 = vsyncadd %s158, 0
          %s165 = sadd.s32 %s21, %s162
          %s166 = smul.addr %s165, 8
          %s167 = scalar_lea.hbm %s0, %s166
          %s168 = sshll.u32 %s167, 4
          %s169 = int_to_ptr.hbm [resolvable:$true] %s168
          %s170 = sshll.u32 %s161, 4
          %s171 = int_to_ptr.vmem [resolvable:$true] %s170
          %176 = dma.hbm_to_vmem [thread:$0]  %s169, 512, %s171, %s158, 128, 128, 8
        $region28: #{tpu_custom_call.1} parent=23 // pred_fallthru
          _
      $region24: #{tpu_custom_call.1} parent=5 // pred_fallthru
        _
      %p177 = scmp.le.s32.totalorder 1, %s13
      %p178 = scmp.lt.s32.totalorder %s13, 9
      %p179 = pnand %p177, %p178
      %p180 = pneg %p179
      // Predicated region
      $region29: #{tpu_custom_call.1} parent=5 // pred_check
        _
      $region30: #{tpu_custom_call.1} parent=5 // pred_check_branch
        %182 = sbr.rel (%p179) target = $region32
      $region31: #{tpu_custom_call.1} parent=5 // pred_region
        %s183 = ssub.s32 %s13, 1
        %s184 = sand.u32 %s40, 1
        %s185 = scalar_lea.sflag [#allocation5], %s184
        %s186 = sand.u32 %s40, 1
        %s187 = smul.addr %s186, 32
        %s188 = scalar_lea.vmem [#allocation4], %s187
        // Predicated region
        $region33: #{tpu_custom_call.1} parent=31 // pred_check
          %p189 = pneg %p53
        $region34: #{tpu_custom_call.1} parent=31 // pred_check_branch
          %191 = sbr.rel (%p189) target = $region36
        $region35: #{tpu_custom_call.1} parent=31 // pred_region
          %193 = dma.done %s185, 512
        $region36: #{tpu_custom_call.1} parent=31 // pred_fallthru
          _
        %s194 = sand.u32 %s40, 1
        %s195 = scalar_lea.sflag [#allocation5], %s194
        %s196 = sand.u32 %s40, 1
        %s197 = smul.addr %s196, 32
        %s198 = scalar_lea.vmem [#allocation4], %s197
        %p199 = pneg %p53
        %p200 = pneg %p50
        %p201 = scmp.lt.s32.totalorder %s23, 0
        %s202 = scalar_select %p201, %s23, 0
        %s203 = scalar_lea.vmem %s1, %s202
        %p204 = pneg %p79
        %p205 = pneg %p76
        %p206 = pneg %p100
        %p207 = pneg %p97
        %p208 = pneg %p126
        %p209 = pneg %p123
        %s210 = smul.u32 4, %s22
        %p211 = scmp.lt.s32.totalorder %s210, 31
        %s212 = scalar_select %p211, %s210, 31
        %s213 = smul.addr %s212, 8
        %s214 = scalar_lea.vmem %s3, %s213
        %s215 = smul.u32 4, %s22
        %p216 = scmp.lt.s32.totalorder %s23, 0
        %s217 = scalar_select %p216, %s23, 0
        %s218 = scalar_lea.vmem %s1, %s217
        %s219 = smul.u32 4, %s22
        %p220 = scmp.lt.s32.totalorder %s219, 31
        %s221 = scalar_select %p220, %s219, 31
        %s222 = smul.addr %s221, 8
        %s223 = scalar_lea.vmem %s3, %s222
        %s224 = smul.u32 4, %s22
        %p225 = scmp.eq.s32.totalorder %s23, 0
        // Predicated region
        $region37: #{tpu_custom_call.1} parent=31 // pred_check
          %p226 = pneg %p225
        $region38: #{tpu_custom_call.1} parent=31 // pred_check_branch
          %228 = sbr.rel (%p226) target = $region40
        $region39: #{tpu_custom_call.1} parent=31 // pred_region
          %vm229 = vcmask 7168
          %230 = vst.msk [vmem:[#allocation2] sm:$0xff] %vm229, 0.0
          %231 = vst.msk [vmem:[#allocation2 + $0x8] sm:$0xff] %vm229, 0.0
          %232 = vst.msk [vmem:[#allocation2 + $0x10] sm:$0xff] %vm229, 0.0
          %233 = vst.msk [vmem:[#allocation2 + $0x18] sm:$0xff] %vm229, 0.0
        $region40: #{tpu_custom_call.1} parent=31 // pred_fallthru
          _
        %v234 = vld [vmem:[%s188] sm:$0xff]
        %v235 = vld [vmem:[%s188 + $0x8] sm:$0xff]
        %v236 = vld [vmem:[%s188 + $0x10] sm:$0xff]
        %v237 = vld [vmem:[%s188 + $0x18] sm:$0xff]
        %v238 = vld [vmem:[%s218] sm:$0x1]
        %v239 = vld [vmem:[#allocation2] sm:$0xff]
        %v240 = vld [vmem:[#allocation2 + $0x8] sm:$0xff]
        %v241 = vld [vmem:[#allocation2 + $0x10] sm:$0xff]
        %v242 = vld [vmem:[#allocation2 + $0x18] sm:$0xff]
        %v244 = vperm.slane %v238, 0
        %v246 = vmul.f32 %v234, %v244
        %v247 = vmul.f32 %v235, %v244
        %v248 = vmul.f32 %v236, %v244
        %v249 = vmul.f32 %v237, %v244
        %250 = vadd.xlane.f32.xlu0 %v246
        %v251 = vpop.xlane.xlu0 %250
        %252 = vadd.xlane.f32.xlu0 %v247
        %v253 = vpop.xlane.xlu0 %252
        %254 = vadd.xlane.f32.xlu0 %v248
        %v255 = vpop.xlane.xlu0 %254
        %256 = vadd.xlane.f32.xlu0 %v249
        %v257 = vpop.xlane.xlu0 %256
        %v258 = vadd.f32 %v239, %v251
        %v259 = vadd.f32 %v240, %v253
        %v260 = vadd.f32 %v241, %v255
        %v261 = vadd.f32 %v242, %v257
        %vm262 = vcmask 7168
        %263 = vst.msk [vmem:[#allocation2] sm:$0xff] %vm262, %v258
        %264 = vst.msk [vmem:[#allocation2 + $0x8] sm:$0xff] %vm262, %v259
        %265 = vst.msk [vmem:[#allocation2 + $0x10] sm:$0xff] %vm262, %v260
        %266 = vst.msk [vmem:[#allocation2 + $0x18] sm:$0xff] %vm262, %v261
        // Predicated region
        $region41: #{tpu_custom_call.1} parent=31 // pred_check
          %p267 = pneg %p225
        $region42: #{tpu_custom_call.1} parent=31 // pred_check_branch
          %269 = sbr.rel (%p267) target = $region44
        $region43: #{tpu_custom_call.1} parent=31 // pred_region
          %v270 = vld [vmem:[#allocation2] sm:$0xff]
          %v271 = vld [vmem:[#allocation2 + $0x8] sm:$0xff]
          %v272 = vld [vmem:[#allocation2 + $0x10] sm:$0xff]
          %v273 = vld [vmem:[#allocation2 + $0x18] sm:$0xff]
          %s274 = sld [smem:[#allocation3]]
          %v275 = vstv %s274
          %v276 = vadd.f32 %v270, %v275
          %v277 = vadd.f32 %v271, %v275
          %v278 = vadd.f32 %v272, %v275
          %v279 = vadd.f32 %v273, %v275
          %280 = vst.msk [vmem:[%s223] sm:$0xff] %vm262, %v276
          %281 = vst.msk [vmem:[%s223 + $0x8] sm:$0xff] %vm262, %v277
          %282 = vst.msk [vmem:[%s223 + $0x10] sm:$0xff] %vm262, %v278
          %283 = vst.msk [vmem:[%s223 + $0x18] sm:$0xff] %vm262, %v279
        $region44: #{tpu_custom_call.1} parent=31 // pred_fallthru
          _
        %s284 = smul.u32 4, %s22
        %p285 = scmp.lt.s32.totalorder %s284, 31
        %s286 = scalar_select %p285, %s284, 31
        %s287 = smul.addr %s286, 8
        %s288 = scalar_lea.vmem %s3, %s287
        // Predicated region
        $region45: #{tpu_custom_call.1} parent=31 // pred_check
          %p289 = pneg %p123
        $region46: #{tpu_custom_call.1} parent=31 // pred_check_branch
          %291 = sbr.rel (%p289) target = $region48
        $region47: #{tpu_custom_call.1} parent=31 // pred_region
          %s292 = smul.u32 4, %s22
        $region48: #{tpu_custom_call.1} parent=31 // pred_fallthru
          _
      $region32: #{tpu_custom_call.1} parent=5 // pred_fallthru
        _
      %p293 = scmp.le.s32.totalorder 2, %s13
      // Predicated region
      $region49: #{tpu_custom_call.1} parent=5 // pred_check
        %p294 = pneg %p293
      $region50: #{tpu_custom_call.1} parent=5 // pred_check_branch
        %296 = sbr.rel (%p294) target = $region52
      $region51: #{tpu_custom_call.1} parent=5 // pred_region
        %s297 = ssub.s32 %s13, 2
        // Predicated region
        $region53: #{tpu_custom_call.1} parent=51 // pred_check
          %p298 = pneg %p129
        $region54: #{tpu_custom_call.1} parent=51 // pred_check_branch
          %300 = sbr.rel (%p298) target = $region56
        $region55: #{tpu_custom_call.1} parent=51 // pred_region
          %s301 = smul.u32 4, %s24
          %p302 = scmp.lt.s32.totalorder %s301, 31
          %s303 = scalar_select %p302, %s301, 31
          %s304 = smul.addr %s303, 8
          %s305 = scalar_lea.vmem %s3, %s304
        $region56: #{tpu_custom_call.1} parent=51 // pred_fallthru
          _
      $region52: #{tpu_custom_call.1} parent=5 // pred_fallthru
        _
    $region6: #{tpu_custom_call.1} parent=1 // loop_footer
      %s17 = sadd.s32 1, %s13
    $region7: #{tpu_custom_call.1} parent=1 // loop_footer_branch
      %12 = sbr.rel target = $region3
    $region8: #{tpu_custom_call.1} parent=1 // loop_exit
      _
    %306 = vsyncpa [#allocation5], 1
    %s307 = scalar_lea.sflag [#allocation5], 1
    %308 = vsyncpa %s307, 1

</llo_original>
